<compile_context>
chip_gen: v7x
topology: tpu7x:2x2x1
jax: 0.10.0
libtpu: 0.0.40
codegen_flags: <defaults>
</compile_context>

<pallas_src>
import functools

import jax
import jax.numpy as jnp
from jax.experimental import pallas as pl
from jax.experimental.pallas import tpu as pltpu


EPS = 1e-5          # matches torch.nn.LayerNorm default
_MIN_GRID_STEPS = 4  # keep >= this many steps so v7x can shard across 2 TCs


def _round_up(x, m):
    return ((x + m - 1) // m) * m


def _colorwise_ln_kernel(x_ref, gamma_ref, beta_ref, o_ref, *, c, k):
    # Tile: (bb, k*c, tr).  Each of the k channel-groups (c original channels
    # packed onto the sublane axis) is normalized over its own c channels.
    inv_c = 1.0 / c
    for g in range(k):                       # k is tiny & static -> unrolled
        lo = g * c
        xg = x_ref[:, lo:lo + c, :].astype(jnp.float32)        # (bb, c, tr)
        mean = jnp.sum(xg, axis=1, keepdims=True) * inv_c      # XLU sublane reduce
        xc = xg - mean
        var = jnp.sum(xc * xc, axis=1, keepdims=True) * inv_c  # biased, like torch
        y = xc * jax.lax.rsqrt(var + EPS)
        y = y * gamma_ref[lo:lo + c, :] + beta_ref[lo:lo + c, :]
        o_ref[:, lo:lo + c, :] = y.astype(o_ref.dtype)


def colorwise_layernorm(x_nchw, gamma, beta, *, target_tile_bytes=None):
    """x_nchw: (B, C, H, W); gamma, beta: (C,). Returns (B, C, H, W)."""
    B, C, H, W = x_nchw.shape
    S = H * W
    itemsize = jnp.dtype(x_nchw.dtype).itemsize
    sub = 8 * (4 // itemsize)        # sublane pack: 8 (f32) / 16 (bf16) / 32 (i8)

    if target_tile_bytes is None:
        # Generation-aware default: a small fraction of physical VMEM
        # (~4 MiB on 128 MiB v5e/v6e, ~2 MiB on 64 MiB v7x), >= 1 MiB.
        try:
            vmem_cap = pltpu.get_tpu_info().vmem_capacity_bytes
            target_tile_bytes = max(1 << 20, min(4 << 20, vmem_cap // 32))
        except Exception:
            target_tile_bytes = 2 << 20

    # Pack k batch elements onto the sublane axis so a small C fills the vreg.
    k_max = max(1, sub // C)
    k = 1
    for d in range(1, min(k_max, B) + 1):
        if B % d == 0:
            k = d
    Bk, Ck = B // k, k * C
    c_pad = _round_up(Ck, sub)       # honest sublane-padded channel extent

    x = x_nchw.reshape(Bk, Ck, S)    # free reshape, native layout

    def tile_bytes(bb, tr):          # VMEM footprint incl. sublane/lane padding
        return bb * c_pad * _round_up(tr, 128) * itemsize

    # Lane tile: full S when it fits (fully contiguous DMA per (b, c) row),
    # otherwise the largest multiple of 128 under the byte budget.
    if tile_bytes(1, S) <= target_tile_bytes:
        tr = S
    else:
        tr = max(128, (target_tile_bytes // (c_pad * 128 * itemsize)) * 128)
        tr = min(tr, _round_up(S, 128))
        if tr >= S:
            tr = S
    grid_s = pl.cdiv(S, tr)          # ragged last tile: Pallas edge masking

    # Batch block: largest divisor of Bk under the budget that still keeps
    # enough total grid steps.
    fit = [d for d in range(1, Bk + 1)
           if Bk % d == 0 and tile_bytes(d, tr) <= target_tile_bytes]
    if not fit:
        fit = [1]
    ok = [d for d in fit if (Bk // d) * grid_s >= _MIN_GRID_STEPS]
    bb = max(ok) if ok else max(fit)

    # If the grid collapsed, split the spatial axis before giving up (v7x).
    total_steps = (Bk // bb) * grid_s
    if total_steps < _MIN_GRID_STEPS:
        need_s = -(-_MIN_GRID_STEPS // (Bk // bb))
        tr_new = max(512, _round_up(-(-S // need_s), 128))
        if tr_new < tr:
            tr = tr_new
            grid_s = pl.cdiv(S, tr)
            total_steps = (Bk // bb) * grid_s

    # Affine params: fp32 cast, group tiling, (Ck, 1) shaping hoisted here.
    gamma2 = jnp.tile(gamma.astype(jnp.float32), (k,)).reshape(Ck, 1)
    beta2 = jnp.tile(beta.astype(jnp.float32), (k,)).reshape(Ck, 1)

    tile_in = tile_bytes(bb, tr)
    tile_f32 = bb * c_pad * _round_up(tr, 128) * 4
    # Triple-buffer the input only when tiles are tiny (per-step DMA shorter
    # than the fixed ~0.35us step overhead) and the grid actually iterates.
    use_buf3 = (tile_in <= 256 * 1024) and (total_steps >= 3)
    x_spec_kwargs = dict(pipeline_mode=pl.Buffered(3)) if use_buf3 else {}
    n_in_bufs = 3 if use_buf3 else 2

    vmem_limit = (n_in_bufs * tile_in + 2 * tile_in      # in + out buffers
                  + 4 * tile_f32 + (2 << 20))            # f32 temps + slack
    vmem_limit = int(min(56 << 20, max(16 << 20, vmem_limit)))

    kernel = functools.partial(_colorwise_ln_kernel, c=C, k=k)

    out = pl.pallas_call(
        kernel,
        out_shape=jax.ShapeDtypeStruct((Bk, Ck, S), x_nchw.dtype),
        grid_spec=pltpu.PrefetchScalarGridSpec(
            num_scalar_prefetch=0,
            grid=(Bk // bb, grid_s),
            in_specs=[
                pl.BlockSpec((bb, Ck, tr), lambda b, s: (b, 0, s),
                             **x_spec_kwargs),
                pl.BlockSpec((Ck, 1), lambda b, s: (0, 0)),
                pl.BlockSpec((Ck, 1), lambda b, s: (0, 0)),
            ],
            out_specs=pl.BlockSpec((bb, Ck, tr), lambda b, s: (b, 0, s)),
        ),
        compiler_params=pltpu.CompilerParams(
            dimension_semantics=("parallel", "parallel"),
            vmem_limit_bytes=vmem_limit,
        ),
        cost_estimate=pl.CostEstimate(
            flops=8 * B * C * S,
            transcendentals=B * S,
            bytes_accessed=2 * B * C * S * itemsize + 2 * C * 4,
        ),
    )(x, gamma2, beta2)

    return out.reshape(B, C, H, W)


def _reference(x_nchw, gamma, beta):
    x = x_nchw.astype(jnp.float32)
    mean = jnp.mean(x, axis=1, keepdims=True)
    var = jnp.mean((x - mean) ** 2, axis=1, keepdims=True)
    y = (x - mean) / jnp.sqrt(var + EPS)
    y = y * gamma.reshape(1, -1, 1, 1) + beta.reshape(1, -1, 1, 1)
    return y.astype(x_nchw.dtype)


if __name__ == "__main__":
    key = jax.random.PRNGKey(0)
    kx, kg, kb = jax.random.split(key, 3)
    B, C, H, W = 2, 4, 16, 16
    x = jax.random.normal(kx, (B, C, H, W), dtype=jnp.float32)

    # Deterministic affine params (perturbed from the LayerNorm default init so
    # the gamma/beta broadcast path is actually exercised).
    gamma = 1.0 + 0.1 * jax.random.normal(kg, (C,), dtype=jnp.float32)
    beta = 0.1 * jax.random.normal(kb, (C,), dtype=jnp.float32)

    out = colorwise_layernorm(x, gamma, beta)
    out = jax.block_until_ready(out)

    ref = _reference(x, gamma, beta)
    assert out.shape == (B, C, H, W)
    assert jnp.allclose(out, ref, atol=1e-4, rtol=1e-5), "mismatch vs reference"

    print("KERNEL_OK")
</pallas_src>

<mosaic_0001>
module attributes {stable_mosaic.version = 11 : i64} {
  func.func @_colorwise_ln_kernel(%arg0: i32, %arg1: i32, %arg2: memref<1x8x256xf32, #tpu.memory_space<vmem>>, %arg3: memref<8x1xf32, #tpu.memory_space<vmem>>, %arg4: memref<8x1xf32, #tpu.memory_space<vmem>>, %arg5: memref<1x8x256xf32, #tpu.memory_space<vmem>>) attributes {dimension_semantics = [#tpu.dimension_semantics<parallel>, #tpu.dimension_semantics<parallel>], iteration_bounds = array<i64: 1, 1>, scalar_prefetch = 0 : i64, scratch_operands = 0 : i64, tpu.core_type = #tpu.core_type<tc>, window_params = [{transform_indices = @transform_0, window_bounds = array<i64: 1, 8, 256>}, {pipeline_mode = #tpu.pipeline_mode<synchronous>, transform_indices = @transform_1, window_bounds = array<i64: 8, 1>}, {pipeline_mode = #tpu.pipeline_mode<synchronous>, transform_indices = @transform_2, window_bounds = array<i64: 8, 1>}, {transform_indices = @transform_3, window_bounds = array<i64: 1, 8, 256>}]} {
    %c0 = arith.constant 0 : index
    %c0_0 = arith.constant 0 : index
    %c0_1 = arith.constant 0 : index
    %0 = vector.load %arg2[%c0, %c0_0, %c0_1] : memref<1x8x256xf32, #tpu.memory_space<vmem>>, vector<1x4x256xf32>
    %cst = arith.constant dense<0.000000e+00> : vector<1x256xf32>
    %1 = vector.multi_reduction <add>, %0, %cst [1] : vector<1x4x256xf32> to vector<1x256xf32>
    %2 = vector.shape_cast %1 : vector<1x256xf32> to vector<1x1x256xf32>
    %cst_2 = arith.constant 2.500000e-01 : f32
    %3 = vector.broadcast %cst_2 : f32 to vector<1x1x256xf32>
    %4 = arith.mulf %2, %3 : vector<1x1x256xf32>
    %5 = vector.broadcast %4 : vector<1x1x256xf32> to vector<1x4x256xf32>
    %6 = arith.subf %0, %5 : vector<1x4x256xf32>
    %7 = arith.mulf %6, %6 : vector<1x4x256xf32>
    %cst_3 = arith.constant dense<0.000000e+00> : vector<1x256xf32>
    %8 = vector.multi_reduction <add>, %7, %cst_3 [1] : vector<1x4x256xf32> to vector<1x256xf32>
    %9 = vector.shape_cast %8 : vector<1x256xf32> to vector<1x1x256xf32>
    %cst_4 = arith.constant 2.500000e-01 : f32
    %10 = vector.broadcast %cst_4 : f32 to vector<1x1x256xf32>
    %11 = arith.mulf %9, %10 : vector<1x1x256xf32>
    %cst_5 = arith.constant 9.99999974E-6 : f32
    %12 = vector.broadcast %cst_5 : f32 to vector<1x1x256xf32>
    %13 = arith.addf %11, %12 : vector<1x1x256xf32>
    %14 = math.rsqrt %13 : vector<1x1x256xf32>
    %15 = vector.broadcast %14 : vector<1x1x256xf32> to vector<1x4x256xf32>
    %16 = arith.mulf %6, %15 : vector<1x4x256xf32>
    %c0_6 = arith.constant 0 : index
    %c0_7 = arith.constant 0 : index
    %17 = vector.load %arg3[%c0_6, %c0_7] : memref<8x1xf32, #tpu.memory_space<vmem>>, vector<4x1xf32>
    %18 = vector.shape_cast %17 : vector<4x1xf32> to vector<1x4x1xf32>
    %19 = vector.broadcast %18 : vector<1x4x1xf32> to vector<1x4x256xf32>
    %20 = arith.mulf %16, %19 : vector<1x4x256xf32>
    %c0_8 = arith.constant 0 : index
    %c0_9 = arith.constant 0 : index
    %21 = vector.load %arg4[%c0_8, %c0_9] : memref<8x1xf32, #tpu.memory_space<vmem>>, vector<4x1xf32>
    %22 = vector.shape_cast %21 : vector<4x1xf32> to vector<1x4x1xf32>
    %23 = vector.broadcast %22 : vector<1x4x1xf32> to vector<1x4x256xf32>
    %24 = arith.addf %20, %23 : vector<1x4x256xf32>
    %c0_10 = arith.constant 0 : index
    %c0_11 = arith.constant 0 : index
    %c0_12 = arith.constant 0 : index
    %25 = vector.load %arg5[%c0_10, %c0_11, %c0_12] : memref<1x8x256xf32, #tpu.memory_space<vmem>>, vector<1x4x256xf32>
    tpu.vector_store %arg5[%c0_10, %c0_11, %c0_12], %24 {strides = array<i32>} : memref<1x8x256xf32, #tpu.memory_space<vmem>>, vector<1x4x256xf32>,
    %c0_13 = arith.constant 0 : index
    %c4 = arith.constant 4 : index
    %c0_14 = arith.constant 0 : index
    %26 = vector.load %arg2[%c0_13, %c4, %c0_14] : memref<1x8x256xf32, #tpu.memory_space<vmem>>, vector<1x4x256xf32>
    %cst_15 = arith.constant dense<0.000000e+00> : vector<1x256xf32>
    %27 = vector.multi_reduction <add>, %26, %cst_15 [1] : vector<1x4x256xf32> to vector<1x256xf32>
    %28 = vector.shape_cast %27 : vector<1x256xf32> to vector<1x1x256xf32>
    %cst_16 = arith.constant 2.500000e-01 : f32
    %29 = vector.broadcast %cst_16 : f32 to vector<1x1x256xf32>
    %30 = arith.mulf %28, %29 : vector<1x1x256xf32>
    %31 = vector.broadcast %30 : vector<1x1x256xf32> to vector<1x4x256xf32>
    %32 = arith.subf %26, %31 : vector<1x4x256xf32>
    %33 = arith.mulf %32, %32 : vector<1x4x256xf32>
    %cst_17 = arith.constant dense<0.000000e+00> : vector<1x256xf32>
    %34 = vector.multi_reduction <add>, %33, %cst_17 [1] : vector<1x4x256xf32> to vector<1x256xf32>
    %35 = vector.shape_cast %34 : vector<1x256xf32> to vector<1x1x256xf32>
    %cst_18 = arith.constant 2.500000e-01 : f32
    %36 = vector.broadcast %cst_18 : f32 to vector<1x1x256xf32>
    %37 = arith.mulf %35, %36 : vector<1x1x256xf32>
    %cst_19 = arith.constant 9.99999974E-6 : f32
    %38 = vector.broadcast %cst_19 : f32 to vector<1x1x256xf32>
    %39 = arith.addf %37, %38 : vector<1x1x256xf32>
    %40 = math.rsqrt %39 : vector<1x1x256xf32>
    %41 = vector.broadcast %40 : vector<1x1x256xf32> to vector<1x4x256xf32>
    %42 = arith.mulf %32, %41 : vector<1x4x256xf32>
    %c4_20 = arith.constant 4 : index
    %c0_21 = arith.constant 0 : index
    %43 = vector.load %arg3[%c4_20, %c0_21] : memref<8x1xf32, #tpu.memory_space<vmem>>, vector<4x1xf32>
    %44 = vector.shape_cast %43 : vector<4x1xf32> to vector<1x4x1xf32>
    %45 = vector.broadcast %44 : vector<1x4x1xf32> to vector<1x4x256xf32>
    %46 = arith.mulf %42, %45 : vector<1x4x256xf32>
    %c4_22 = arith.constant 4 : index
    %c0_23 = arith.constant 0 : index
    %47 = vector.load %arg4[%c4_22, %c0_23] : memref<8x1xf32, #tpu.memory_space<vmem>>, vector<4x1xf32>
    %48 = vector.shape_cast %47 : vector<4x1xf32> to vector<1x4x1xf32>
    %49 = vector.broadcast %48 : vector<1x4x1xf32> to vector<1x4x256xf32>
    %50 = arith.addf %46, %49 : vector<1x4x256xf32>
    %c0_24 = arith.constant 0 : index
    %c4_25 = arith.constant 4 : index
    %c0_26 = arith.constant 0 : index
    %51 = vector.load %arg5[%c0_24, %c4_25, %c0_26] : memref<1x8x256xf32, #tpu.memory_space<vmem>>, vector<1x4x256xf32>
    tpu.vector_store %arg5[%c0_24, %c4_25, %c0_26], %50 {strides = array<i32>} : memref<1x8x256xf32, #tpu.memory_space<vmem>>, vector<1x4x256xf32>,
    return
  }
  func.func @transform_0(%arg0: i32, %arg1: i32) -> (i32, i32, i32) {
    %c0_i32 = arith.constant 0 : i32
    %c0_i32_0 = arith.constant 0 : i32
    return %arg0, %c0_i32, %arg1 : i32, i32, i32
  }
  func.func @transform_1(%arg0: i32, %arg1: i32) -> (i32, i32) {
    %c0_i32 = arith.constant 0 : i32
    %c0_i32_0 = arith.constant 0 : i32
    %c0_i32_1 = arith.constant 0 : i32
    return %c0_i32, %c0_i32_0 : i32, i32
  }
  func.func @transform_2(%arg0: i32, %arg1: i32) -> (i32, i32) {
    %c0_i32 = arith.constant 0 : i32
    %c0_i32_0 = arith.constant 0 : i32
    %c0_i32_1 = arith.constant 0 : i32
    return %c0_i32, %c0_i32_0 : i32, i32
  }
  func.func @transform_3(%arg0: i32, %arg1: i32) -> (i32, i32, i32) {
    %c0_i32 = arith.constant 0 : i32
    %c0_i32_0 = arith.constant 0 : i32
    return %arg0, %c0_i32, %arg1 : i32, i32, i32
  }
}

</mosaic_0001>

<llo_original>
// kernel: tpu_custom_call.1
$region0: #{tpu_custom_call.1}
  #allocation0 [shape = 'u32[]', space=smem, size = 0x4, offset = 0x4, fixed_abs, tag = 'smem constant byte address 0x4 - core index']
  #allocation1 [shape = 'u32[144,128]{1,0:T(1,128)}', space=vmem, size = 0x12000, scoped, tag = 'internal scratch']
  %s0 = inlined_call_operand.vmem [shape: f32[1,8,256], index: 0, kind: input, shape index: {}]
  %s1 = inlined_call_operand.vmem [shape: f32[8,1], index: 1, kind: input, shape index: {}]
  %s2 = inlined_call_operand.vmem [shape: f32[8,1], index: 2, kind: input, shape index: {}]
  %s3 = inlined_call_operand.hbm [shape: f32[1,8,256], index: 3, kind: output, shape index: {}]
  %s4 = sld [smem:[#allocation0]]
  $region22: #{tpu_custom_call.1} parent=0
    _
  %s6 = ssub.s32 1, %s4
  %s7 = scalar_select 0, %s6, %s4
  $region1: #{tpu_custom_call.1} parent=0
    #allocation2 [shape = 'u8[8192]{0}', space=vmem, size = 0x2000, scoped, tag = 'output window, operand 0, single buffered']
    #allocation3 [shape = 's32[1]{0}', space=sflag, size = 0x4, scoped, tag = 'scoped memory for tpu_custom_call.1']
    %8 = vsyncpa [#allocation3], 0
    // Predicated region
    $region2: #{tpu_custom_call.1} parent=1 // pred_check
      _
    $region3: #{tpu_custom_call.1} parent=1 // pred_check_branch
      %10 = sbr.rel (0) target = $region5
    $region4: #{tpu_custom_call.1} parent=1 // pred_region
      _
    $region5: #{tpu_custom_call.1} parent=1 // pred_fallthru
      _
    // Predicated region
    $region6: #{tpu_custom_call.1} parent=1 // pred_check
      _
    $region7: #{tpu_custom_call.1} parent=1 // pred_check_branch
      %12 = sbr.rel (0) target = $region9
    $region8: #{tpu_custom_call.1} parent=1 // pred_region
      _
    $region9: #{tpu_custom_call.1} parent=1 // pred_fallthru
      _
    // Predicated region
    $region10: #{tpu_custom_call.1} parent=1 // pred_check
      _
    $region11: #{tpu_custom_call.1} parent=1 // pred_check_branch
      %14 = sbr.rel (0) target = $region13
    $region12: #{tpu_custom_call.1} parent=1 // pred_region
      _
    $region13: #{tpu_custom_call.1} parent=1 // pred_fallthru
      _
    %v15 = vld [vmem:[%s0] sm:$0xf]
    %v16 = vld [vmem:[%s0 + $0x8] sm:$0xf]
    %vm17 = vcmask 1043456
    %v18 = vsel %vm17, %v15, 0.0
    %v19 = vrot.slane %v18, 4
    %v20 = vadd.f32 %v18, %v19
    %v21 = vrot.slane %v20, 2
    %v22 = vadd.f32 %v20, %v21
    %v23 = vrot.slane %v22, 1
    %v24 = vadd.f32 %v22, %v23
    %v25 = vsel %vm17, %v16, 0.0
    %v26 = vrot.slane %v25, 4
    %v27 = vadd.f32 %v25, %v26
    %v28 = vrot.slane %v27, 2
    %v29 = vadd.f32 %v27, %v28
    %v30 = vrot.slane %v29, 1
    %v31 = vadd.f32 %v29, %v30
    %v32 = vmul.f32 %v24, 0.25
    %v33 = vmul.f32 %v31, 0.25
    %v34 = vsub.f32 %v15, %v32
    %v35 = vsub.f32 %v16, %v33
    %v36 = vmul.f32 %v34, %v34
    %v37 = vmul.f32 %v35, %v35
    %v38 = vsel %vm17, %v36, 0.0
    %v39 = vrot.slane %v38, 4
    %v40 = vadd.f32 %v38, %v39
    %v41 = vrot.slane %v40, 2
    %v42 = vadd.f32 %v40, %v41
    %v43 = vrot.slane %v42, 1
    %v44 = vadd.f32 %v42, %v43
    %v45 = vsel %vm17, %v37, 0.0
    %v46 = vrot.slane %v45, 4
    %v47 = vadd.f32 %v45, %v46
    %v48 = vrot.slane %v47, 2
    %v49 = vadd.f32 %v47, %v48
    %v50 = vrot.slane %v49, 1
    %v51 = vadd.f32 %v49, %v50
    %v52 = vmul.f32 %v44, 0.25
    %v53 = vmul.f32 %v51, 0.25
    %v54 = vadd.f32 %v52, 1e-05
    %v55 = vadd.f32 %v53, 1e-05
    %v56 = vrsqrt.pop %v54
    %v57 = vrsqrt.pop %v55
    %v58 = vmul.f32 %v34, %v56
    %v59 = vmul.f32 %v35, %v57
    %v60 = vld [vmem:[%s1] sm:$0xf]
    %62 = vset.pattern.permute.xlu0 0
    %63 = vperm.xlu0 %62, %v60
    %v64 = vpop.permute.xlu0 %63
    %v66 = vmul.f32 %v58, %v64
    %v67 = vmul.f32 %v59, %v64
    %v68 = vld [vmem:[%s2] sm:$0xf]
    %70 = vset.pattern.permute.xlu0 0
    %71 = vperm.xlu0 %70, %v68
    %v72 = vpop.permute.xlu0 %71
    %v74 = vadd.f32 %v66, %v72
    %v75 = vadd.f32 %v67, %v72
    %76 = vst [vmem:[#allocation2] sm:$0xf] %v74
    %77 = vst [vmem:[#allocation2 + $0x8] sm:$0xf] %v75
    %v78 = vld [vmem:[%s0] sm:$0xf0]
    %v79 = vld [vmem:[%s0 + $0x8] sm:$0xf0]
    %v82 = vrot.slane %v78, 4
    %v83 = vrot.slane %v79, 4
    %v86 = vsel %vm17, %v82, 0.0
    %v87 = vrot.slane %v86, 4
    %v88 = vadd.f32 %v86, %v87
    %v89 = vrot.slane %v88, 2
    %v90 = vadd.f32 %v88, %v89
    %v91 = vrot.slane %v90, 1
    %v92 = vadd.f32 %v90, %v91
    %v93 = vsel %vm17, %v83, 0.0
    %v94 = vrot.slane %v93, 4
    %v95 = vadd.f32 %v93, %v94
    %v96 = vrot.slane %v95, 2
    %v97 = vadd.f32 %v95, %v96
    %v98 = vrot.slane %v97, 1
    %v99 = vadd.f32 %v97, %v98
    %v100 = vmul.f32 %v92, 0.25
    %v101 = vmul.f32 %v99, 0.25
    %v102 = vsub.f32 %v78, %v100
    %v103 = vsub.f32 %v79, %v101
    %v104 = vmul.f32 %v102, %v102
    %v105 = vmul.f32 %v103, %v103
    %v108 = vrot.slane %v104, 4
    %v109 = vrot.slane %v105, 4
    %v112 = vsel %vm17, %v108, 0.0
    %v113 = vrot.slane %v112, 4
    %v114 = vadd.f32 %v112, %v113
    %v115 = vrot.slane %v114, 2
    %v116 = vadd.f32 %v114, %v115
    %v117 = vrot.slane %v116, 1
    %v118 = vadd.f32 %v116, %v117
    %v119 = vsel %vm17, %v109, 0.0
    %v120 = vrot.slane %v119, 4
    %v121 = vadd.f32 %v119, %v120
    %v122 = vrot.slane %v121, 2
    %v123 = vadd.f32 %v121, %v122
    %v124 = vrot.slane %v123, 1
    %v125 = vadd.f32 %v123, %v124
    %v126 = vmul.f32 %v118, 0.25
    %v127 = vmul.f32 %v125, 0.25
    %v128 = vadd.f32 %v126, 1e-05
    %v129 = vadd.f32 %v127, 1e-05
    %v130 = vrsqrt.pop %v128
    %v131 = vrsqrt.pop %v129
    %v132 = vmul.f32 %v102, %v130
    %v133 = vmul.f32 %v103, %v131
    %v134 = vld [vmem:[%s1 + $0x4] sm:$0xf]
    %136 = vset.pattern.permute.xlu0 0
    %137 = vperm.xlu0 %136, %v134
    %v138 = vpop.permute.xlu0 %137
    %v139 = vrot.slane %v138, 4
    %v141 = vmul.f32 %v132, %v139
    %v142 = vmul.f32 %v133, %v139
    %v143 = vld [vmem:[%s2 + $0x4] sm:$0xf]
    %145 = vset.pattern.permute.xlu0 0
    %146 = vperm.xlu0 %145, %v143
    %v147 = vpop.permute.xlu0 %146
    %v148 = vrot.slane %v147, 4
    %v150 = vadd.f32 %v141, %v148
    %v151 = vadd.f32 %v142, %v148
    %152 = vst [vmem:[#allocation2] sm:$0xf0] %v150
    %153 = vst [vmem:[#allocation2 + $0x8] sm:$0xf0] %v151
    // Predicated region
    $region14: #{tpu_custom_call.1} parent=1 // pred_check
      _
    $region15: #{tpu_custom_call.1} parent=1 // pred_check_branch
      %155 = sbr.rel (0) target = $region17
    $region16: #{tpu_custom_call.1} parent=1 // pred_region
      %s157 = ssub.s32 256, 256
      %158 = vsyncadd [#allocation3], %s157
      %s160 = sshll.u32 [#allocation2], 4
      %s161 = int_to_ptr.vmem [resolvable:$true] %s160
      %163 = dma.vmem_to_hbm [thread:$0]  %s161, 256, %s3, [#allocation3]
    $region17: #{tpu_custom_call.1} parent=1 // pred_fallthru
      _
    // Predicated region
    $region18: #{tpu_custom_call.1} parent=1 // pred_check
      _
    $region19: #{tpu_custom_call.1} parent=1 // pred_check_branch
      %165 = sbr.rel (0) target = $region21
    $region20: #{tpu_custom_call.1} parent=1 // pred_region
      %166 = dma.done [#allocation3], 256
    $region21: #{tpu_custom_call.1} parent=1 // pred_fallthru
      _
    %167 = vsyncpa [#allocation3], 1

</llo_original>
